<compile_context>
chip_gen: v5e
topology: v5e:2x2
jax: 0.10.0
libtpu: 0.0.40
codegen_flags: <defaults>
</compile_context>

<pallas_src>
import functools

import jax
import jax.numpy as jnp
from jax import lax
from jax.experimental import pallas as pl
from jax.experimental.pallas import tpu as pltpu

_SUB = 32                 # sublane extent of the packed layout
_LANE = 128               # lane extent
_CHUNK = _SUB * _LANE     # 4096 elements per packed row
_SUBROWS = 8              # rows per accumulation sub-chunk inside a block


def _activation_loss_kernel(x_ref, o_ref, acc_ref, *, norm_type, block_rows,
                            sub_rows, n_rows, needs_mask, unroll):
    k = pl.program_id(0)
    n_blocks = pl.num_programs(0)

    @pl.when(k == 0)
    def _():
        acc_ref[...] = jnp.zeros_like(acc_ref)

    n_sub = block_rows // sub_rows

    def accumulate(masked):
        def body(i, carry):
            start = pl.multiple_of(i * sub_rows, sub_rows)
            chunk = x_ref[pl.ds(start, sub_rows), :, :]
            if norm_type == "abs":
                # abs in the native dtype (exact; packed 2-per-op for bf16),
                # widen to f32 only for the accumulation.
                vals = jnp.abs(chunk).astype(jnp.float32)
            else:  # 'norm'
                v = chunk.astype(jnp.float32)
                vals = v * v
            if masked:
                # Row mask at (sub_rows, 1, 1) granularity, broadcast by the
                # select. Only the final (ragged) block takes this path.
                row = (lax.broadcasted_iota(jnp.int32, (sub_rows, 1, 1), 0)
                       + k * block_rows + start)
                vals = jnp.where(row < n_rows, vals, 0.0)
            acc_ref[...] += vals
            return carry

        lax.fori_loop(0, n_sub, body, 0, unroll=unroll)

    if needs_mask:
        is_tail = k == n_blocks - 1

        @pl.when(is_tail)
        def _():
            accumulate(True)

        @pl.when(k < n_blocks - 1)
        def _():
            accumulate(False)
    else:
        accumulate(False)

    @pl.when(k == n_blocks - 1)
    def _():
        # Single cross-lane/sublane reduce (XLU) + scalar store; the wrapper
        # only applies mean / sqrt / loss_weight on this scalar.
        o_ref[0, 0] = jnp.sum(acc_ref[...])


def activation_loss(feat_T, *, loss_weight=1.0, norm_type="abs",
                    block_rows=512):
    """Pallas implementation of ActivationLoss.forward (scalar output)."""
    assert norm_type in ("norm", "abs")
    n_elem = feat_T.size
    itemsize = jnp.dtype(feat_T.dtype).itemsize

    flat = feat_T.reshape(-1)
    n_rows = n_elem // _CHUNK
    rem = n_elem - n_rows * _CHUNK

    tail = None
    if n_rows == 0:
        # Tensor smaller than one packed row: pad it (tiny, negligible copy)
        # so the kernel still has a full (1, 32, 128) slab to stream.
        flat_main = jnp.pad(flat, (0, _CHUNK - n_elem))
        n_rows = 1
    elif rem:
        # Avoid a full-tensor pad copy: the aligned prefix streams through the
        # kernel, the < 4096-element remainder is reduced by a tiny jnp op.
        flat_main = flat[: n_rows * _CHUNK]
        tail = flat[n_rows * _CHUNK:]
    else:
        flat_main = flat        # aligned: pure bitcast reshape, zero HBM copy

    x = flat_main.reshape(n_rows, _SUB, _LANE)

    # Block sizing: large blocks amortize per-step overhead; cap the input
    # block at 16 MiB so 2x double-buffering + scratch fits every generation.
    max_rows = max(_SUBROWS, (16 << 20) // (_CHUNK * itemsize))
    block_rows = max(1, min(block_rows, n_rows, max_rows))
    if block_rows >= _SUBROWS:
        block_rows -= block_rows % _SUBROWS
        sub_rows = _SUBROWS
    else:
        sub_rows = block_rows

    n_blocks = -(-n_rows // block_rows)
    needs_mask = (n_blocks * block_rows) != n_rows
    n_sub = block_rows // sub_rows
    unroll = min(8, n_sub)

    block_bytes = block_rows * _CHUNK * itemsize
    acc_bytes = sub_rows * _CHUNK * 4
    vmem_limit = int(2 * block_bytes + acc_bytes + (8 << 20))

    kernel = functools.partial(
        _activation_loss_kernel,
        norm_type=norm_type,
        block_rows=block_rows,
        sub_rows=sub_rows,
        n_rows=n_rows,
        needs_mask=needs_mask,
        unroll=unroll,
    )

    partial_sum = pl.pallas_call(
        kernel,
        out_shape=jax.ShapeDtypeStruct((1, 1), jnp.float32),
        grid_spec=pltpu.PrefetchScalarGridSpec(
            num_scalar_prefetch=0,
            grid=(n_blocks,),
            in_specs=[pl.BlockSpec((block_rows, _SUB, _LANE),
                                   lambda k: (k, 0, 0))],
            out_specs=pl.BlockSpec(memory_space=pltpu.MemorySpace.SMEM),
            scratch_shapes=[pltpu.VMEM((sub_rows, _SUB, _LANE), jnp.float32)],
        ),
        compiler_params=pltpu.CompilerParams(
            dimension_semantics=("arbitrary",),
            vmem_limit_bytes=vmem_limit),
        cost_estimate=pl.CostEstimate(
            flops=2 * n_rows * _CHUNK,
            transcendentals=0,
            bytes_accessed=n_rows * _CHUNK * itemsize + 4),
    )(x)

    total = partial_sum[0, 0]
    if tail is not None:
        t = tail.astype(jnp.float32)
        total = total + (jnp.sum(jnp.abs(t)) if norm_type == "abs"
                         else jnp.sum(t * t))

    if norm_type == "abs":
        val = -(total / jnp.float32(n_elem))
    else:
        val = -jnp.sqrt(total)
    return jnp.float32(loss_weight) * val


def _reference(feat_T, *, loss_weight=1.0, norm_type="abs"):
    x = feat_T.reshape(feat_T.shape[0], -1).astype(jnp.float32)
    if norm_type == "abs":
        return loss_weight * (-jnp.mean(jnp.abs(x)))
    return loss_weight * (-jnp.sqrt(jnp.sum(x * x)))


if __name__ == "__main__":
    key = jax.random.PRNGKey(0)

    # 1) Small NCHW teacher featuremap (module default norm_type='abs').
    feat_T = jax.random.normal(key, (2, 4, 16, 16), dtype=jnp.float32)
    loss_abs = activation_loss(feat_T, loss_weight=1.0, norm_type="abs")
    jax.block_until_ready(loss_abs)
    ref_abs = _reference(feat_T, loss_weight=1.0, norm_type="abs")
    assert jnp.allclose(loss_abs, ref_abs, rtol=1e-5, atol=1e-6), (loss_abs, ref_abs)

    loss_norm = activation_loss(feat_T, loss_weight=0.5, norm_type="norm")
    jax.block_until_ready(loss_norm)
    ref_norm = _reference(feat_T, loss_weight=0.5, norm_type="norm")
    assert jnp.allclose(loss_norm, ref_norm, rtol=1e-5, atol=1e-6), (loss_norm, ref_norm)

    # 2) bf16 input: native-dtype streaming, abs done packed in bf16.
    feat_bf16 = jax.random.normal(key, (2, 4, 16, 16), dtype=jnp.bfloat16)
    loss_bf = activation_loss(feat_bf16, loss_weight=1.0, norm_type="abs")
    jax.block_until_ready(loss_bf)
    ref_bf = _reference(feat_bf16, loss_weight=1.0, norm_type="abs")
    assert jnp.allclose(loss_bf, ref_bf, rtol=1e-4, atol=1e-5), (loss_bf, ref_bf)

    # 3) Aligned multi-block stream (16 packed rows, 2 blocks, unmasked fast path).
    feat_big = jax.random.normal(key, (4, 16, 32, 32), dtype=jnp.float32)
    loss_big = activation_loss(feat_big, loss_weight=1.0, norm_type="norm",
                               block_rows=8)
    jax.block_until_ready(loss_big)
    ref_big = _reference(feat_big, loss_weight=1.0, norm_type="norm")
    assert jnp.allclose(loss_big, ref_big, rtol=1e-5, atol=1e-5), (loss_big, ref_big)

    # 4) Ragged last block (3 packed rows, block_rows=2): gated masked path.
    feat_odd = jax.random.normal(key, (3, 4, 32, 32), dtype=jnp.float32)
    loss_o1 = activation_loss(feat_odd, loss_weight=1.0, norm_type="norm",
                              block_rows=2)
    jax.block_until_ready(loss_o1)
    ref_o1 = _reference(feat_odd, loss_weight=1.0, norm_type="norm")
    assert jnp.allclose(loss_o1, ref_o1, rtol=1e-5, atol=1e-6), (loss_o1, ref_o1)

    loss_o2 = activation_loss(feat_odd, loss_weight=1.0, norm_type="abs",
                              block_rows=1)
    jax.block_until_ready(loss_o2)
    ref_o2 = _reference(feat_odd, loss_weight=1.0, norm_type="abs")
    assert jnp.allclose(loss_o2, ref_o2, rtol=1e-5, atol=1e-6), (loss_o2, ref_o2)

    # 5) Non-4096-aligned element count (5043 = 1 packed row + 947-elem tail):
    #    exercises the pad-free tail path.
    feat_tail = jax.random.normal(key, (1, 3, 41, 41), dtype=jnp.float32)
    loss_t1 = activation_loss(feat_tail, loss_weight=1.0, norm_type="abs")
    jax.block_until_ready(loss_t1)
    ref_t1 = _reference(feat_tail, loss_weight=1.0, norm_type="abs")
    assert jnp.allclose(loss_t1, ref_t1, rtol=1e-5, atol=1e-6), (loss_t1, ref_t1)

    loss_t2 = activation_loss(feat_tail, loss_weight=2.0, norm_type="norm")
    jax.block_until_ready(loss_t2)
    ref_t2 = _reference(feat_tail, loss_weight=2.0, norm_type="norm")
    assert jnp.allclose(loss_t2, ref_t2, rtol=1e-5, atol=1e-5), (loss_t2, ref_t2)

    print("KERNEL_OK")
</pallas_src>

<mosaic_0001>
module attributes {stable_mosaic.version = 11 : i64} {
  func.func @_activation_loss_kernel(%arg0: i32, %arg1: memref<1x32x128xf32, #tpu.memory_space<vmem>>, %arg2: memref<1x1xf32, #tpu.memory_space<smem>>, %arg3: memref<1x32x128xf32, #tpu.memory_space<vmem>>) attributes {dimension_semantics = [#tpu.dimension_semantics<arbitrary>], iteration_bounds = array<i64: 1>, scalar_prefetch = 0 : i64, scratch_operands = 1 : i64, tpu.core_type = #tpu.core_type<tc>, window_params = [{transform_indices = @transform_0, window_bounds = array<i64: 1, 32, 128>}, {transform_indices = @transform_1, window_bounds = array<i64: 1, 1>}]} {
    %c0_i32 = arith.constant 0 : i32
    %0 = arith.cmpi eq, %arg0, %c0_i32 : i32
    %1 = arith.extui %0 : i1 to i32
    %c0_i32_0 = arith.constant 0 : i32
    %2 = arith.cmpi ne, %1, %c0_i32_0 : i32
    scf.if %2 {
      %cst = arith.constant 0.000000e+00 : f32
      %14 = vector.broadcast %cst : f32 to vector<1x32x128xf32>
      %c0_12 = arith.constant 0 : index
      %c0_13 = arith.constant 0 : index
      %c0_14 = arith.constant 0 : index
      %15 = vector.load %arg3[%c0_12, %c0_13, %c0_14] : memref<1x32x128xf32, #tpu.memory_space<vmem>>, vector<1x32x128xf32>
      tpu.vector_store %arg3[%c0_12, %c0_13, %c0_14], %14 {strides = array<i32>} : memref<1x32x128xf32, #tpu.memory_space<vmem>>, vector<1x32x128xf32>,
    } else {
    }
    %c0_i32_1 = arith.constant 0 : i32
    %c1_i32 = arith.constant 1 : i32
    %3 = arith.muli %c0_i32_1, %c1_i32 : i32
    %4 = tpu.assume_multiple %3, 1 : i32
    %5 = arith.index_cast %4 : i32 to index
    %c0 = arith.constant 0 : index
    %c0_2 = arith.constant 0 : index
    %6 = vector.load %arg1[%5, %c0, %c0_2] : memref<1x32x128xf32, #tpu.memory_space<vmem>>, vector<1x32x128xf32>
    %7 = math.absf %6 : vector<1x32x128xf32>
    %c0_3 = arith.constant 0 : index
    %c0_4 = arith.constant 0 : index
    %c0_5 = arith.constant 0 : index
    %8 = vector.load %arg3[%c0_3, %c0_4, %c0_5] : memref<1x32x128xf32, #tpu.memory_space<vmem>>, vector<1x32x128xf32>
    %9 = arith.addf %8, %7 : vector<1x32x128xf32>
    %c0_6 = arith.constant 0 : index
    %c0_7 = arith.constant 0 : index
    %c0_8 = arith.constant 0 : index
    %10 = vector.load %arg3[%c0_6, %c0_7, %c0_8] : memref<1x32x128xf32, #tpu.memory_space<vmem>>, vector<1x32x128xf32>
    tpu.vector_store %arg3[%c0_6, %c0_7, %c0_8], %9 {strides = array<i32>} : memref<1x32x128xf32, #tpu.memory_space<vmem>>, vector<1x32x128xf32>,
    %c1_i32_9 = arith.constant 1 : i32
    %c0_i32_10 = arith.constant 0 : i32
    %11 = arith.cmpi eq, %arg0, %c0_i32_10 : i32
    %12 = arith.extui %11 : i1 to i32
    %c0_i32_11 = arith.constant 0 : i32
    %13 = arith.cmpi ne, %12, %c0_i32_11 : i32
    scf.if %13 {
      %c0_12 = arith.constant 0 : index
      %c0_13 = arith.constant 0 : index
      %c0_14 = arith.constant 0 : index
      %14 = vector.load %arg3[%c0_12, %c0_13, %c0_14] : memref<1x32x128xf32, #tpu.memory_space<vmem>>, vector<1x32x128xf32>
      %15 = vector.shape_cast %14 : vector<1x32x128xf32> to vector<1x1x32x128xf32>
      %cst = arith.constant dense<0.000000e+00> : vector<1xf32>
      %16 = vector.multi_reduction <add>, %15, %cst [1, 2, 3] : vector<1x1x32x128xf32> to vector<1xf32>
      %17 = vector.shape_cast %16 : vector<1xf32> to vector<1x1x1x1xf32>
      %18 = vector.extract %17[0, 0, 0, 0] : f32 from vector<1x1x1x1xf32>
      %c0_15 = arith.constant 0 : index
      %c0_16 = arith.constant 0 : index
      %19 = memref.load %arg2[%c0_15, %c0_16] : memref<1x1xf32, #tpu.memory_space<smem>>
      memref.store %18, %arg2[%c0_15, %c0_16] : memref<1x1xf32, #tpu.memory_space<smem>>
    } else {
    }
    return
  }
  func.func @transform_0(%arg0: i32) -> (i32, i32, i32) {
    %c0_i32 = arith.constant 0 : i32
    %c0_i32_0 = arith.constant 0 : i32
    %c0_i32_1 = arith.constant 0 : i32
    return %arg0, %c0_i32, %c0_i32_0 : i32, i32, i32
  }
  func.func @transform_1(%arg0: i32) -> (i32, i32) {
    %c0_i32 = arith.constant 0 : i32
    %c0_i32_0 = arith.constant 0 : i32
    %c0_i32_1 = arith.constant 0 : i32
    return %c0_i32, %c0_i32_0 : i32, i32
  }
}

</mosaic_0001>

<llo_original>
// kernel: tpu_custom_call.1
$region0: #{tpu_custom_call.1}
  #allocation0 [shape = 'u32[]', space=smem, size = 0x4, offset = 0x4, fixed_abs, tag = 'smem constant byte address 0x4 - core index']
  #allocation1 [shape = 'u32[72,128]{1,0:T(1,128)}', space=vmem, size = 0x9000, scoped, tag = 'internal scratch']
  #allocation2 [shape = 'f32[1,32,128]{2,1,0:T(8,128)}', space=vmem, size = 0x4000, scoped, tag = 'scratch operand']
  %s0 = inlined_call_operand.hbm [shape: f32[1,32,128], index: 0, kind: input, shape index: {}]
  %s1 = inlined_call_operand.hbm [shape: f32[1,1], index: 1, kind: output, shape index: {}]
  %s2 = sld [smem:[#allocation0]]
  $region26: #{tpu_custom_call.1} parent=0
    _
  %s4 = ssub.s32 1, %s2
  %s5 = scalar_select 0, %s4, %s2
  $region1: #{tpu_custom_call.1} parent=0
    #allocation3 [shape = 'u8[16384]{0}', space=vmem, size = 0x4000, scoped, tag = 'input window, operand 0, single buffered']
    #allocation4 [shape = 's32[1]{0}', space=sflag, size = 0x4, scoped, tag = 'scoped memory for tpu_custom_call.1']
    #allocation5 [shape = 's32[1]{0}', space=sflag, size = 0x4, scoped, tag = 'scoped memory for tpu_custom_call.1']
    #allocation6 [shape = 'u8[512]{0}', space=smem, size = 0x200, scoped, tag = 'output window, operand 0, single buffered']
    %6 = vsyncpa [#allocation4], 0
    %7 = vsyncpa [#allocation5], 0
    // Predicated region
    $region2: #{tpu_custom_call.1} parent=1 // pred_check
      _
    $region3: #{tpu_custom_call.1} parent=1 // pred_check_branch
      %9 = sbr.rel (0) target = $region5
    $region4: #{tpu_custom_call.1} parent=1 // pred_region
      %11 = vsyncadd [#allocation4], 0
      %s12 = sshll.u32 %s0, 4
      %s13 = int_to_ptr.hbm [resolvable:$true] %s12
      %s14 = sshll.u32 [#allocation3], 4
      %s15 = int_to_ptr.vmem [resolvable:$true] %s14
      %20 = dma.hbm_to_vmem [thread:$0]  %s13, 512, %s15, [#allocation4], 128, 128, 8
    $region5: #{tpu_custom_call.1} parent=1 // pred_fallthru
      _
    // Predicated region
    $region6: #{tpu_custom_call.1} parent=1 // pred_check
      _
    $region7: #{tpu_custom_call.1} parent=1 // pred_check_branch
      %22 = sbr.rel (0) target = $region9
    $region8: #{tpu_custom_call.1} parent=1 // pred_region
      %24 = dma.done [#allocation4], 512
    $region9: #{tpu_custom_call.1} parent=1 // pred_fallthru
      _
    %p25 = scmp.eq.s32.totalorder 0, 0
    // Predicated region
    $region10: #{tpu_custom_call.1} parent=1 // pred_check
      %p26 = pneg %p25
    $region11: #{tpu_custom_call.1} parent=1 // pred_check_branch
      %28 = sbr.rel (%p26) target = $region13
    $region12: #{tpu_custom_call.1} parent=1 // pred_region
      %29 = vst [vmem:[#allocation2] sm:$0xff] 0.0
      %30 = vst [vmem:[#allocation2 + $0x8] sm:$0xff] 0.0
      %31 = vst [vmem:[#allocation2 + $0x10] sm:$0xff] 0.0
      %32 = vst [vmem:[#allocation2 + $0x18] sm:$0xff] 0.0
    $region13: #{tpu_custom_call.1} parent=1 // pred_fallthru
      _
    %s33 = smul.u32 0, 32
    %s34 = scalar_lea.vmem [#allocation3], %s33
    %v35 = vld [vmem:[%s34] sm:$0xff]
    %v36 = vld [vmem:[%s34 + $0x8] sm:$0xff]
    %v37 = vld [vmem:[%s34 + $0x10] sm:$0xff]
    %v38 = vld [vmem:[%s34 + $0x18] sm:$0xff]
    %v39 = vand.u32 2147483647, %v35
    %v40 = vand.u32 2147483647, %v36
    %v41 = vand.u32 2147483647, %v37
    %v42 = vand.u32 2147483647, %v38
    %v43 = vld [vmem:[#allocation2] sm:$0xff]
    %v44 = vld [vmem:[#allocation2 + $0x8] sm:$0xff]
    %v45 = vld [vmem:[#allocation2 + $0x10] sm:$0xff]
    %v46 = vld [vmem:[#allocation2 + $0x18] sm:$0xff]
    %v47 = vadd.f32 %v43, %v39
    %v48 = vadd.f32 %v44, %v40
    %v49 = vadd.f32 %v45, %v41
    %v50 = vadd.f32 %v46, %v42
    %51 = vst [vmem:[#allocation2] sm:$0xff] %v47
    %52 = vst [vmem:[#allocation2 + $0x8] sm:$0xff] %v48
    %53 = vst [vmem:[#allocation2 + $0x10] sm:$0xff] %v49
    %54 = vst [vmem:[#allocation2 + $0x18] sm:$0xff] %v50
    // Predicated region
    $region14: #{tpu_custom_call.1} parent=1 // pred_check
      %p55 = pneg %p25
    $region15: #{tpu_custom_call.1} parent=1 // pred_check_branch
      %57 = sbr.rel (%p55) target = $region17
    $region16: #{tpu_custom_call.1} parent=1 // pred_region
      %v58 = vld [vmem:[#allocation2] sm:$0xff]
      %v59 = vld [vmem:[#allocation2 + $0x8] sm:$0xff]
      %v60 = vld [vmem:[#allocation2 + $0x10] sm:$0xff]
      %v61 = vld [vmem:[#allocation2 + $0x18] sm:$0xff]
      %v62 = vadd.f32 %v58, %v59
      %v63 = vadd.f32 %v62, %v60
      %v64 = vadd.f32 %v63, %v61
      %65 = vadd.xlane.f32.xlu0 %v64
      %v66 = vpop.xlane.xlu0 %65
      %v67 = vrot.slane %v66, 4
      %v68 = vadd.f32 %v66, %v67
      %v69 = vrot.slane %v68, 2
      %v70 = vadd.f32 %v68, %v69
      %v71 = vrot.slane %v70, 1
      %v72 = vadd.f32 %v70, %v71
      %s73 = vtos %v72
      %s74 = scalar_lea.smem [#allocation6], 0
      %75 = sst [smem:[%s74]] %s73
    $region17: #{tpu_custom_call.1} parent=1 // pred_fallthru
      _
    // Predicated region
    $region18: #{tpu_custom_call.1} parent=1 // pred_check
      _
    $region19: #{tpu_custom_call.1} parent=1 // pred_check_branch
      %77 = sbr.rel (0) target = $region21
    $region20: #{tpu_custom_call.1} parent=1 // pred_region
      %79 = vsyncadd [#allocation5], 0
      %s81 = sshll.u32 %s1, 4
      %s82 = int_to_ptr.hbm [resolvable:$true] %s81
      %84 = dma.smem_to_hbm [#allocation6], 16, %s82, [#allocation5]
    $region21: #{tpu_custom_call.1} parent=1 // pred_fallthru
      _
    // Predicated region
    $region22: #{tpu_custom_call.1} parent=1 // pred_check
      _
    $region23: #{tpu_custom_call.1} parent=1 // pred_check_branch
      %86 = sbr.rel (0) target = $region25
    $region24: #{tpu_custom_call.1} parent=1 // pred_region
      %88 = dma.done [#allocation5], 16
    $region25: #{tpu_custom_call.1} parent=1 // pred_fallthru
      _
    %89 = sfence
    %90 = vsyncpa [#allocation4], 1
    %91 = vsyncpa [#allocation5], 1

</llo_original>
